<compile_context>
chip_gen: v7x
topology: tpu7x:2x2x1
jax: 0.10.0
libtpu: 0.0.40
codegen_flags: <defaults>
</compile_context>

<pallas_src>
from functools import partial

import jax
import jax.numpy as jnp
from jax.experimental import pallas as pl
from jax.experimental.pallas import tpu as pltpu


def _round_up(n, m):
    return ((n + m - 1) // m) * m


def ffnn_kernel(xt_ref, v_ref, vb_ref, w_ref, wb_ref, o_ref):
    # xt_ref: (inp_pad, TB)      f32 or bf16   (x transposed, batch on lanes)
    # v_ref : (hid, inp_pad)     bf16          (V.weight, zero-padded cols)
    # vb_ref: (hid, 1)           f32
    # w_ref : (OUT_SUB, hid)     bf16          (W.weight, zero-padded rows)
    # wb_ref: (OUT_SUB, 1)       f32           (padded rows = -1e30)
    # o_ref : (OUT_SUB, TB)      f32           (lane-dense store)
    xt = xt_ref[...].astype(jnp.bfloat16)

    # Hidden layer: tanh(V @ x^T + b_V) -> (hid, TB), f32.
    h = jnp.tanh(
        jnp.dot(v_ref[...], xt, preferred_element_type=jnp.float32)
        + vb_ref[...]
    )

    # Output layer: W @ h + b_W -> (OUT_SUB, TB), f32.
    # Padded output rows have zero weights and bias -1e30, so exp() below
    # underflows to exactly 0 for them (relies on wb/logits staying f32 and
    # out >= 1 real row existing).
    logits = (
        jnp.dot(w_ref[...], h.astype(jnp.bfloat16),
                preferred_element_type=jnp.float32)
        + wb_ref[...]
    )

    # Per-column softmax over the (padded) output sublane axis.
    m = jnp.max(logits, axis=0, keepdims=True)          # (1, TB)
    e = jnp.exp(logits - m)                              # (OUT_SUB, TB)
    denom = jnp.sum(e, axis=0, keepdims=True)            # (1, TB), >= 1
    # Exact divide (NOT pl.reciprocal(approx=True)) so probabilities sum to 1.
    o_ref[...] = e / denom


def prepare_ffnn_params(V_w, V_b, W_w, W_b):
    """One-time weight preparation (hoisted out of the per-call path).

    V_w: (hid, inp), V_b: (hid,), W_w: (out, hid), W_b: (out,).
    Returns (v, vb, w, wb) for ffnn_forward:
      v  (hid, inp_pad)   bf16, zero-padded input cols
      vb (hid, 1)         f32
      w  (OUT_SUB, hid)   bf16, zero-padded output rows (OUT_SUB = ceil8(out))
      wb (OUT_SUB, 1)     f32,  -1e30 in padded rows (exp -> 0; must stay f32)
    """
    hid, inp = V_w.shape
    out = W_w.shape[0]
    assert out >= 1, "-1e30 padding trick requires at least one real output"
    inp_pad = _round_up(max(inp, 8), 8)
    out_sub = _round_up(max(out, 8), 8)

    v = jnp.zeros((hid, inp_pad), jnp.bfloat16)
    v = v.at[:, :inp].set(jnp.asarray(V_w, jnp.float32).astype(jnp.bfloat16))
    vb = jnp.asarray(V_b, jnp.float32).reshape(hid, 1)

    w = jnp.zeros((out_sub, hid), jnp.bfloat16)
    w = w.at[:out, :].set(jnp.asarray(W_w, jnp.float32).astype(jnp.bfloat16))
    wb = jnp.full((out_sub, 1), -1e30, jnp.float32)   # keep f32 (see kernel)
    wb = wb.at[:out, 0].set(jnp.asarray(W_b, jnp.float32))
    return v, vb, w, wb


@partial(jax.jit, static_argnames=("out",))
def ffnn_forward(x, v, vb, w, wb, *, out):
    """x: (B, inp) or (inp,) -> softmax probabilities (B, out) or (out,)."""
    squeeze = x.ndim == 1
    x2 = x[None, :] if squeeze else x
    # Accept bf16 activations directly (halves x DMA bytes); otherwise f32.
    if x2.dtype != jnp.bfloat16:
        x2 = x2.astype(jnp.float32)

    B, inp = x2.shape
    hid, inp_pad = v.shape
    out_sub = w.shape[0]

    # Batch goes on the lane axis.  Tile the batch with TB lanes per grid
    # step: up to 1024 (mem-bound regime wants big tiles) but keep >= 2 grid
    # steps when B allows so the "parallel" axis feeds both v7x TensorCores.
    b128 = _round_up(B, 128)
    TB = min(1024, max(128, (b128 // 2) // 128 * 128))
    B_pad = _round_up(B, TB)

    # Transpose to (inp, B) and zero-pad feature rows / batch cols.  Padded
    # batch columns produce finite junk that is sliced off below.
    xt = jnp.pad(x2.T, ((0, inp_pad - inp), (0, B_pad - B)))

    # TODO(synk): for realistic inp/hid (thousands) tile the contraction dims
    # (grid axis over hid marked "arbitrary" + f32 accumulator) and raise
    # vmem_limit_bytes; v7x's 64 MiB VMEM (32 MiB scoped default) won't hold
    # fully-resident weights that still fit v5e/v6e.  Also single-buffer the
    # constant weight blocks (pipeline_mode=pl.Buffered(1)) at that point.
    yT = pl.pallas_call(
        ffnn_kernel,
        out_shape=jax.ShapeDtypeStruct((out_sub, B_pad), jnp.float32),
        grid_spec=pltpu.PrefetchScalarGridSpec(
            num_scalar_prefetch=0,
            grid=(B_pad // TB,),
            in_specs=[
                pl.BlockSpec((inp_pad, TB), lambda i: (0, i)),    # x^T tile
                pl.BlockSpec((hid, inp_pad), lambda i: (0, 0)),   # V (resident)
                pl.BlockSpec((hid, 1), lambda i: (0, 0)),         # b_V
                pl.BlockSpec((out_sub, hid), lambda i: (0, 0)),   # W (resident)
                pl.BlockSpec((out_sub, 1), lambda i: (0, 0)),     # b_W
            ],
            out_specs=pl.BlockSpec((out_sub, TB), lambda i: (0, i)),
        ),
        compiler_params=pltpu.CompilerParams(
            dimension_semantics=("parallel",),  # batch tiles split across TCs
        ),
    )(xt, v, vb, w, wb)

    y = yT[:out, :B].T                                  # (B, out)
    return y[0] if squeeze else y


def xavier_uniform(key, shape):
    # nn.init.xavier_uniform on a (fan_out, fan_in) Linear weight
    fan_out, fan_in = shape
    bound = (6.0 / (fan_in + fan_out)) ** 0.5
    return jax.random.uniform(key, shape, jnp.float32, -bound, bound)


if __name__ == "__main__":
    inp, hid, out = 16, 32, 4
    B = 256

    key = jax.random.PRNGKey(0)
    kx, kv, kvb, kw, kwb = jax.random.split(key, 5)

    # Deterministic parameter init (shapes as in FFNN.__init__)
    V_w = xavier_uniform(kv, (hid, inp))
    W_w = xavier_uniform(kw, (out, hid))
    # PyTorch Linear default bias init: U(-1/sqrt(fan_in), 1/sqrt(fan_in))
    V_b = jax.random.uniform(kvb, (hid,), jnp.float32,
                             -1.0 / inp ** 0.5, 1.0 / inp ** 0.5)
    W_b = jax.random.uniform(kwb, (out,), jnp.float32,
                             -1.0 / hid ** 0.5, 1.0 / hid ** 0.5)

    x = jax.random.normal(kx, (B, inp), jnp.float32)

    # One-time weight prep (transpose / bf16 cast / pad), then call.
    v, vb, w, wb = prepare_ffnn_params(V_w, V_b, W_w, W_b)
    y = jax.block_until_ready(ffnn_forward(x, v, vb, w, wb, out=out))
    assert y.shape == (B, out)

    # --- Reference 1: same mixed precision as the kernel (tight check) ------
    xq = x.astype(jnp.bfloat16).astype(jnp.float32)
    Vq = V_w.astype(jnp.bfloat16).astype(jnp.float32)
    Wq = W_w.astype(jnp.bfloat16).astype(jnp.float32)
    h_q = jnp.tanh(xq @ Vq.T + V_b)
    hq = h_q.astype(jnp.bfloat16).astype(jnp.float32)
    y_ref_q = jax.nn.softmax(hq @ Wq.T + W_b, axis=-1)
    assert jnp.allclose(y, y_ref_q, atol=3e-3, rtol=3e-3)

    # --- Reference 2: pure f32 PyTorch-equivalent forward (loose check) -----
    y_ref_f32 = jax.nn.softmax(jnp.tanh(x @ V_w.T + V_b) @ W_w.T + W_b, axis=-1)
    assert jnp.allclose(y, y_ref_f32, atol=3e-2)

    # Probabilities sum to 1 (exact divide in the kernel).
    assert jnp.allclose(jnp.sum(y, axis=-1), 1.0, atol=1e-5)

    # Single-vector path (the original module's 1-D forward) agrees with the
    # corresponding batched row.
    y_single = jax.block_until_ready(ffnn_forward(x[0], v, vb, w, wb, out=out))
    assert y_single.shape == (out,)
    assert jnp.allclose(y_single, y[0], atol=1e-4)

    print("KERNEL_OK")
</pallas_src>

<mosaic_0001>
module attributes {stable_mosaic.version = 11 : i64} {
  func.func @ffnn_kernel(%arg0: i32, %arg1: memref<16x128xf32, #tpu.memory_space<vmem>>, %arg2: memref<32x16xbf16, #tpu.memory_space<vmem>>, %arg3: memref<32x1xf32, #tpu.memory_space<vmem>>, %arg4: memref<8x32xbf16, #tpu.memory_space<vmem>>, %arg5: memref<8x1xf32, #tpu.memory_space<vmem>>, %arg6: memref<8x128xf32, #tpu.memory_space<vmem>>) attributes {dimension_semantics = [#tpu.dimension_semantics<parallel>], iteration_bounds = array<i64: 2>, scalar_prefetch = 0 : i64, scratch_operands = 0 : i64, tpu.core_type = #tpu.core_type<tc>, window_params = [{transform_indices = @transform_0, window_bounds = array<i64: 16, 128>}, {pipeline_mode = #tpu.pipeline_mode<synchronous>, transform_indices = @transform_1, window_bounds = array<i64: 32, 16>}, {pipeline_mode = #tpu.pipeline_mode<synchronous>, transform_indices = @transform_2, window_bounds = array<i64: 32, 1>}, {pipeline_mode = #tpu.pipeline_mode<synchronous>, transform_indices = @transform_3, window_bounds = array<i64: 8, 32>}, {pipeline_mode = #tpu.pipeline_mode<synchronous>, transform_indices = @transform_4, window_bounds = array<i64: 8, 1>}, {transform_indices = @transform_5, window_bounds = array<i64: 8, 128>}]} {
    %c0 = arith.constant 0 : index
    %c0_0 = arith.constant 0 : index
    %0 = vector.load %arg1[%c0, %c0_0] : memref<16x128xf32, #tpu.memory_space<vmem>>, vector<16x128xf32>
    %1 = arith.truncf %0 : vector<16x128xf32> to vector<16x128xbf16>
    %c0_1 = arith.constant 0 : index
    %c0_2 = arith.constant 0 : index
    %2 = vector.load %arg2[%c0_1, %c0_2] : memref<32x16xbf16, #tpu.memory_space<vmem>>, vector<32x16xbf16>
    %cst = arith.constant dense<0.000000e+00> : vector<32x128xf32>
    %3 = tpu.matmul %2, %1, %cst {dimension_numbers = #tpu.dot_dimension_numbers<[1], [0], [0], [1], [0, 0, 1, 1], [], []>} : vector<32x16xbf16>, vector<16x128xbf16>, vector<32x128xf32> -> vector<32x128xf32>
    %c0_3 = arith.constant 0 : index
    %c0_4 = arith.constant 0 : index
    %4 = vector.load %arg3[%c0_3, %c0_4] : memref<32x1xf32, #tpu.memory_space<vmem>>, vector<32x1xf32>
    %5 = vector.broadcast %4 : vector<32x1xf32> to vector<32x128xf32>
    %6 = arith.addf %3, %5 : vector<32x128xf32>
    %7 = math.tanh %6 : vector<32x128xf32>
    %c0_5 = arith.constant 0 : index
    %c0_6 = arith.constant 0 : index
    %8 = vector.load %arg4[%c0_5, %c0_6] : memref<8x32xbf16, #tpu.memory_space<vmem>>, vector<8x32xbf16>
    %9 = arith.truncf %7 : vector<32x128xf32> to vector<32x128xbf16>
    %cst_7 = arith.constant dense<0.000000e+00> : vector<8x128xf32>
    %10 = tpu.matmul %8, %9, %cst_7 {dimension_numbers = #tpu.dot_dimension_numbers<[1], [0], [0], [1], [0, 0, 1, 1], [], []>} : vector<8x32xbf16>, vector<32x128xbf16>, vector<8x128xf32> -> vector<8x128xf32>
    %c0_8 = arith.constant 0 : index
    %c0_9 = arith.constant 0 : index
    %11 = vector.load %arg5[%c0_8, %c0_9] : memref<8x1xf32, #tpu.memory_space<vmem>>, vector<8x1xf32>
    %12 = vector.broadcast %11 : vector<8x1xf32> to vector<8x128xf32>
    %13 = arith.addf %10, %12 : vector<8x128xf32>
    %cst_10 = arith.constant dense<0xFF800000> : vector<128xf32>
    %14 = vector.multi_reduction <maximumf>, %13, %cst_10 [0] : vector<8x128xf32> to vector<128xf32>
    %15 = vector.shape_cast %14 : vector<128xf32> to vector<1x128xf32>
    %16 = vector.broadcast %15 : vector<1x128xf32> to vector<8x128xf32>
    %17 = arith.subf %13, %16 : vector<8x128xf32>
    %18 = math.exp %17 : vector<8x128xf32>
    %cst_11 = arith.constant dense<0.000000e+00> : vector<128xf32>
    %19 = vector.multi_reduction <add>, %18, %cst_11 [0] : vector<8x128xf32> to vector<128xf32>
    %20 = vector.shape_cast %19 : vector<128xf32> to vector<1x128xf32>
    %21 = vector.broadcast %20 : vector<1x128xf32> to vector<8x128xf32>
    %22 = arith.divf %18, %21 : vector<8x128xf32>
    %c0_12 = arith.constant 0 : index
    %c0_13 = arith.constant 0 : index
    %23 = vector.load %arg6[%c0_12, %c0_13] : memref<8x128xf32, #tpu.memory_space<vmem>>, vector<8x128xf32>
    tpu.vector_store %arg6[%c0_12, %c0_13], %22 {strides = array<i32>} : memref<8x128xf32, #tpu.memory_space<vmem>>, vector<8x128xf32>,
    return
  }
  func.func @transform_0(%arg0: i32) -> (i32, i32) {
    %c0_i32 = arith.constant 0 : i32
    %c0_i32_0 = arith.constant 0 : i32
    return %c0_i32, %arg0 : i32, i32
  }
  func.func @transform_1(%arg0: i32) -> (i32, i32) {
    %c0_i32 = arith.constant 0 : i32
    %c0_i32_0 = arith.constant 0 : i32
    %c0_i32_1 = arith.constant 0 : i32
    return %c0_i32, %c0_i32_0 : i32, i32
  }
  func.func @transform_2(%arg0: i32) -> (i32, i32) {
    %c0_i32 = arith.constant 0 : i32
    %c0_i32_0 = arith.constant 0 : i32
    %c0_i32_1 = arith.constant 0 : i32
    return %c0_i32, %c0_i32_0 : i32, i32
  }
  func.func @transform_3(%arg0: i32) -> (i32, i32) {
    %c0_i32 = arith.constant 0 : i32
    %c0_i32_0 = arith.constant 0 : i32
    %c0_i32_1 = arith.constant 0 : i32
    return %c0_i32, %c0_i32_0 : i32, i32
  }
  func.func @transform_4(%arg0: i32) -> (i32, i32) {
    %c0_i32 = arith.constant 0 : i32
    %c0_i32_0 = arith.constant 0 : i32
    %c0_i32_1 = arith.constant 0 : i32
    return %c0_i32, %c0_i32_0 : i32, i32
  }
  func.func @transform_5(%arg0: i32) -> (i32, i32) {
    %c0_i32 = arith.constant 0 : i32
    %c0_i32_0 = arith.constant 0 : i32
    return %c0_i32, %arg0 : i32, i32
  }
}

</mosaic_0001>

<llo_original>
// kernel: ffnn_forward.1
$region0: #{ffnn_forward.1}
  #allocation0 [shape = 'u32[]', space=smem, size = 0x4, offset = 0x4, fixed_abs, tag = 'smem constant byte address 0x4 - core index']
  #allocation1 [shape = 'u32[144,128]{1,0:T(1,128)}', space=vmem, size = 0x12000, scoped, tag = 'internal scratch']
  %s0 = inlined_call_operand.vmem [shape: f32[16,256], index: 0, kind: input, shape index: {}]
  %s1 = inlined_call_operand.vmem [shape: bf16[32,16], index: 1, kind: input, shape index: {}]
  %s2 = inlined_call_operand.vmem [shape: f32[32,1], index: 2, kind: input, shape index: {}]
  %s3 = inlined_call_operand.vmem [shape: bf16[8,32], index: 3, kind: input, shape index: {}]
  %s4 = inlined_call_operand.vmem [shape: f32[8,1], index: 4, kind: input, shape index: {}]
  %s5 = inlined_call_operand.vmem [shape: f32[8,256], index: 5, kind: output, shape index: {}]
  %s6 = sld [smem:[#allocation0]]
  $region91: #{ffnn_forward.1} parent=0
    _
  %s8 = ssub.s32 1, %s6
  %s9 = scalar_select 0, %s8, %s6
  $region1: #{ffnn_forward.1} parent=0
    #allocation2 [shape = 'u8[16384]{0}', space=vmem, size = 0x4000, scoped, tag = 'input window, operand 0']
    loop: start=0, step=1, limit=4
    $region2: #{ffnn_forward.1} parent=1 // loop_pre_header
      _
    $region3: #{ffnn_forward.1} parent=1 // loop_header
      %s11 = sphi 0, %s15
      %p12 = scmp.ge.s32.totalorder %s11, 4
      %s21 = sphi 0, %s23
      %s24 = sphi 0, %s21
      %s25 = sphi 0, %s24
      %s41 = sphi 0, %s25
      %s45 = sphi 0, %s45
      %s47 = sphi 0, %s45
      %s48 = sphi 0, %s47
      %s62 = sphi 0, %s48
      %s66 = sphi 0, %s66
      %s68 = sphi 0, %s66
      %s69 = sphi 0, %s68
      %s83 = sphi 0, %s69
      %s87 = sphi 0, %s87
      %s89 = sphi 0, %s87
      %s90 = sphi 0, %s89
      %s104 = sphi 0, %s90
      %s108 = sphi 0, %s108
      %s110 = sphi 0, %s108
      %s111 = sphi 0, %s110
      %s125 = sphi 0, %s111
      %s131 = sphi 0, %s133
      %s134 = sphi 0, %s131
      %s135 = sphi 0, %s134
      %s151 = sphi 0, %s135
    $region4: #{ffnn_forward.1} parent=1 // loop_header_branch
      %14 = sbr.rel (%p12) target = $region8
    $region5: #{ffnn_forward.1} parent=1 // loop_body
      %s16 = ssub.s32 %s11, 1
      %s17 = ssub.s32 %s11, 2
      %s18 = sadd.s32 %s11, 1
      %s19 = ssub.s32 %s11, %s18
      %p20 = scmp.eq.s32.totalorder %s19, 0
      %s22 = sadd.s32 %s21, 1
      %s23 = scalar_select %p20, %s21, %s22
      %p26 = pneg %p20
      %p27 = scmp.eq.s32.totalorder %s11, 1
      %p28 = por %p26, %p27
      %p29 = scmp.ne.s32.totalorder %s21, %s24
      %p30 = scmp.eq.s32.totalorder %s11, 0
      %p31 = por %p29, %p30
      %p32 = scmp.ne.s32.totalorder %s21, %s24
      %p33 = scmp.eq.s32.totalorder %s16, 1
      %p34 = por %p32, %p33
      %p35 = scmp.ne.s32.totalorder %s24, %s25
      %p36 = scmp.eq.s32.totalorder %s16, 0
      %p37 = por %p35, %p36
      %p38 = scmp.ne.s32.totalorder %s24, %s25
      %p39 = scmp.eq.s32.totalorder %s17, 1
      %p40 = por %p38, %p39
      %p42 = scmp.ne.s32.totalorder %s25, %s41
      %p43 = scmp.eq.s32.totalorder %s17, 0
      %p44 = por %p42, %p43
      %s46 = sadd.s32 %s45, 1
      %p49 = scmp.eq.s32.totalorder %s11, 1
      %p50 = scmp.ne.s32.totalorder %s45, %s47
      %p51 = scmp.eq.s32.totalorder %s11, 0
      %p52 = por %p50, %p51
      %p53 = scmp.ne.s32.totalorder %s45, %s47
      %p54 = scmp.eq.s32.totalorder %s16, 1
      %p55 = por %p53, %p54
      %p56 = scmp.ne.s32.totalorder %s47, %s48
      %p57 = scmp.eq.s32.totalorder %s16, 0
      %p58 = por %p56, %p57
      %p59 = scmp.ne.s32.totalorder %s47, %s48
      %p60 = scmp.eq.s32.totalorder %s17, 1
      %p61 = por %p59, %p60
      %p63 = scmp.ne.s32.totalorder %s48, %s62
      %p64 = scmp.eq.s32.totalorder %s17, 0
      %p65 = por %p63, %p64
      %s67 = sadd.s32 %s66, 1
      %p70 = scmp.eq.s32.totalorder %s11, 1
      %p71 = scmp.ne.s32.totalorder %s66, %s68
      %p72 = scmp.eq.s32.totalorder %s11, 0
      %p73 = por %p71, %p72
      %p74 = scmp.ne.s32.totalorder %s66, %s68
      %p75 = scmp.eq.s32.totalorder %s16, 1
      %p76 = por %p74, %p75
      %p77 = scmp.ne.s32.totalorder %s68, %s69
      %p78 = scmp.eq.s32.totalorder %s16, 0
      %p79 = por %p77, %p78
      %p80 = scmp.ne.s32.totalorder %s68, %s69
      %p81 = scmp.eq.s32.totalorder %s17, 1
      %p82 = por %p80, %p81
      %p84 = scmp.ne.s32.totalorder %s69, %s83
      %p85 = scmp.eq.s32.totalorder %s17, 0
      %p86 = por %p84, %p85
      %s88 = sadd.s32 %s87, 1
      %p91 = scmp.eq.s32.totalorder %s11, 1
      %p92 = scmp.ne.s32.totalorder %s87, %s89
      %p93 = scmp.eq.s32.totalorder %s11, 0
      %p94 = por %p92, %p93
      %p95 = scmp.ne.s32.totalorder %s87, %s89
      %p96 = scmp.eq.s32.totalorder %s16, 1
      %p97 = por %p95, %p96
      %p98 = scmp.ne.s32.totalorder %s89, %s90
      %p99 = scmp.eq.s32.totalorder %s16, 0
      %p100 = por %p98, %p99
      %p101 = scmp.ne.s32.totalorder %s89, %s90
      %p102 = scmp.eq.s32.totalorder %s17, 1
      %p103 = por %p101, %p102
      %p105 = scmp.ne.s32.totalorder %s90, %s104
      %p106 = scmp.eq.s32.totalorder %s17, 0
      %p107 = por %p105, %p106
      %s109 = sadd.s32 %s108, 1
      %p112 = scmp.eq.s32.totalorder %s11, 1
      %p113 = scmp.ne.s32.totalorder %s108, %s110
      %p114 = scmp.eq.s32.totalorder %s11, 0
      %p115 = por %p113, %p114
      %p116 = scmp.ne.s32.totalorder %s108, %s110
      %p117 = scmp.eq.s32.totalorder %s16, 1
      %p118 = por %p116, %p117
      %p119 = scmp.ne.s32.totalorder %s110, %s111
      %p120 = scmp.eq.s32.totalorder %s16, 0
      %p121 = por %p119, %p120
      %p122 = scmp.ne.s32.totalorder %s110, %s111
      %p123 = scmp.eq.s32.totalorder %s17, 1
      %p124 = por %p122, %p123
      %p126 = scmp.ne.s32.totalorder %s111, %s125
      %p127 = scmp.eq.s32.totalorder %s17, 0
      %p128 = por %p126, %p127
      %s129 = ssub.s32 %s11, %s18
      %p130 = scmp.eq.s32.totalorder %s129, 0
      %s132 = sadd.s32 %s131, 1
      %s133 = scalar_select %p130, %s131, %s132
      %p136 = pneg %p130
      %p137 = scmp.eq.s32.totalorder %s11, 1
      %p138 = por %p136, %p137
      %p139 = scmp.ne.s32.totalorder %s131, %s134
      %p140 = scmp.eq.s32.totalorder %s11, 0
      %p141 = por %p139, %p140
      %p142 = scmp.ne.s32.totalorder %s131, %s134
      %p143 = scmp.eq.s32.totalorder %s16, 1
      %p144 = por %p142, %p143
      %p145 = scmp.ne.s32.totalorder %s134, %s135
      %p146 = scmp.eq.s32.totalorder %s16, 0
      %p147 = por %p145, %p146
      %p148 = scmp.ne.s32.totalorder %s134, %s135
      %p149 = scmp.eq.s32.totalorder %s17, 1
      %p150 = por %p148, %p149
      %p152 = scmp.ne.s32.totalorder %s135, %s151
      %p153 = scmp.eq.s32.totalorder %s17, 0
      %p154 = por %p152, %p153
      %p155 = scmp.le.s32.totalorder 1, %s11
      %p156 = scmp.lt.s32.totalorder %s11, 3
      %p157 = pnand %p155, %p156
      %p158 = pneg %p157
      // Predicated region
      $region9: #{ffnn_forward.1} parent=5 // pred_check
        _
      $region10: #{ffnn_forward.1} parent=5 // pred_check_branch
        %160 = sbr.rel (%p157) target = $region12
      $region11: #{ffnn_forward.1} parent=5 // pred_region
        %s161 = ssub.s32 %s11, 1
        // Predicated region
        $region13: #{ffnn_forward.1} parent=11 // pred_check
          %p162 = pneg %p58
        $region14: #{ffnn_forward.1} parent=11 // pred_check_branch
          %164 = sbr.rel (%p162) target = $region16
        $region15: #{ffnn_forward.1} parent=11 // pred_region
          _
        $region16: #{ffnn_forward.1} parent=11 // pred_fallthru
          _
        // Predicated region
        $region17: #{ffnn_forward.1} parent=11 // pred_check
          %p165 = pneg %p79
        $region18: #{ffnn_forward.1} parent=11 // pred_check_branch
          %167 = sbr.rel (%p165) target = $region20
        $region19: #{ffnn_forward.1} parent=11 // pred_region
          _
        $region20: #{ffnn_forward.1} parent=11 // pred_fallthru
          _
        // Predicated region
        $region21: #{ffnn_forward.1} parent=11 // pred_check
          %p168 = pneg %p100
        $region22: #{ffnn_forward.1} parent=11 // pred_check_branch
          %170 = sbr.rel (%p168) target = $region24
        $region23: #{ffnn_forward.1} parent=11 // pred_region
          _
        $region24: #{ffnn_forward.1} parent=11 // pred_fallthru
          _
        // Predicated region
        $region25: #{ffnn_forward.1} parent=11 // pred_check
          %p171 = pneg %p121
        $region26: #{ffnn_forward.1} parent=11 // pred_check_branch
          %173 = sbr.rel (%p171) target = $region28
        $region27: #{ffnn_forward.1} parent=11 // pred_region
          _
        $region28: #{ffnn_forward.1} parent=11 // pred_fallthru
          _
      $region12: #{ffnn_forward.1} parent=5 // pred_fallthru
        _
      %p174 = scmp.lt.s32.totalorder %s11, 2
      // Predicated region
      $region29: #{ffnn_forward.1} parent=5 // pred_check
        %p175 = pneg %p174
      $region30: #{ffnn_forward.1} parent=5 // pred_check_branch
        %177 = sbr.rel (%p175) target = $region32
      $region31: #{ffnn_forward.1} parent=5 // pred_region
        // Predicated region
        $region33: #{ffnn_forward.1} parent=31 // pred_check
          %p178 = pneg %p31
        $region34: #{ffnn_forward.1} parent=31 // pred_check_branch
          %180 = sbr.rel (%p178) target = $region36
        $region35: #{ffnn_forward.1} parent=31 // pred_region
          %s181 = sand.u32 %s21, 1
          %s182 = sand.u32 %s21, 1
          %s183 = smul.addr %s182, 16
          %s184 = scalar_lea.vmem [#allocation2], %s183
          %s185 = smul.addr %s11, 8
          %s186 = scalar_lea.vmem %s0, %s185
          // Predicated region
          $region37: #{ffnn_forward.1} parent=35 // pred_check
            _
          $region38: #{ffnn_forward.1} parent=35 // pred_check_branch
            %188 = sbr.rel (0) target = $region40
          $region39: #{ffnn_forward.1} parent=35 // pred_region
            // Predicated region
            $region41: #{ffnn_forward.1} parent=39 // pred_check
              _
            $region42: #{ffnn_forward.1} parent=39 // pred_check_branch
              %190 = sbr.rel (0) target = $region44
            $region43: #{ffnn_forward.1} parent=39 // pred_region
              // Predicated region
              $region56: #{ffnn_forward.1} parent=43 // pred_check
                _
              $region57: #{ffnn_forward.1} parent=43 // pred_check_branch
                %207 = sbr.rel (0) target = $region59
              $region58: #{ffnn_forward.1} parent=43 // pred_region
                loop: start=0, step=1, limit=1
                $region60: #{ffnn_forward.1} parent=58 // loop_pre_header
                  _
                $region61: #{ffnn_forward.1} parent=58 // loop_header
                  %s209 = sphi 0, %s213
                  %p210 = scmp.ge.s32.totalorder %s209, 1
                  %s214 = sphi %s186, %s186
                  %s215 = sphi %s184, %s184
                $region62: #{ffnn_forward.1} parent=58 // loop_header_branch
                  %212 = sbr.rel (%p210) target = $region66
                $region63: #{ffnn_forward.1} parent=58 // loop_body
                  %v216 = vld [vmem:[%s214] sm:$0xff]
                  %217 = vst [vmem:[%s215] sm:$0xff] %v216
                  %v218 = vld [vmem:[%s214 + $0x10] sm:$0xff]
                  %219 = vst [vmem:[%s215 + $0x8] sm:$0xff] %v218
                $region64: #{ffnn_forward.1} parent=58 // loop_footer
                  %s213 = sadd.s32 1, %s209
                $region65: #{ffnn_forward.1} parent=58 // loop_footer_branch
                  %208 = sbr.rel target = $region61
                $region66: #{ffnn_forward.1} parent=58 // loop_exit
                  _
              $region59: #{ffnn_forward.1} parent=43 // pred_fallthru
                _
              // Predicated region
              $region67: #{ffnn_forward.1} parent=43 // pred_check
                _
              $region68: #{ffnn_forward.1} parent=43 // pred_check_branch
                %221 = sbr.rel target = $region70
              $region69: #{ffnn_forward.1} parent=43 // pred_region
                _
              $region70: #{ffnn_forward.1} parent=43 // pred_fallthru
                _
            $region44: #{ffnn_forward.1} parent=39 // pred_fallthru
              _
            // Predicated region
            $region45: #{ffnn_forward.1} parent=39 // pred_check
              _
            $region46: #{ffnn_forward.1} parent=39 // pred_check_branch
              %192 = sbr.rel target = $region48
            $region47: #{ffnn_forward.1} parent=39 // pred_region
              loop: start=0, step=1, limit=1
              $region49: #{ffnn_forward.1} parent=47 // loop_pre_header
                _
              $region50: #{ffnn_forward.1} parent=47 // loop_header
                %s195 = sphi 0, %s199
                %p196 = scmp.ge.s32.totalorder %s195, 1
                %s200 = sphi %s186, %s186
                %s201 = sphi %s184, %s184
              $region51: #{ffnn_forward.1} parent=47 // loop_header_branch
                %198 = sbr.rel (%p196) target = $region55
              $region52: #{ffnn_forward.1} parent=47 // loop_body
                %v202 = vld [vmem:[%s200] sm:$0xff]
                %203 = vst [vmem:[%s201] sm:$0xff] %v202
                %v204 = vld [vmem:[%s200 + $0x10] sm:$0xff]
                %205 = vst [vmem:[%s201 + $0x8] sm:$0xff] %v204
              $region53: #{ffnn_forward.1} parent=47 // loop_footer
                %s199 = sadd.s32 1, %s195
              $region54: #{ffnn_forward.1} parent=47 // loop_footer_branch
                %194 = sbr.rel target = $region50
              $region55: #{ffnn_forward.1} parent=47 // loop_exit
                _
            $region48: #{ffnn_forward.1} parent=39 // pred_fallthru
              _
          $region40: #{ffnn_forward.1} parent=35 // pred_fallthru
            _
          %222 = vnop
        $region36: #{ffnn_forward.1} parent=31 // pred_fallthru
          _
      $region32: #{ffnn_forward.1} parent=5 // pred_fallthru
        _
      %p223 = scmp.le.s32.totalorder 1, %s11
      %p224 = scmp.lt.s32.totalorder %s11, 3
      %p225 = pnand %p223, %p224
      %p226 = pneg %p225
      // Predicated region
      $region71: #{ffnn_forward.1} parent=5 // pred_check
        _
      $region72: #{ffnn_forward.1} parent=5 // pred_check_branch
        %228 = sbr.rel (%p225) target = $region74
      $region73: #{ffnn_forward.1} parent=5 // pred_region
        %s229 = ssub.s32 %s11, 1
        %s230 = sand.u32 %s24, 1
        %s231 = sand.u32 %s24, 1
        %s232 = smul.addr %s231, 16
        %s233 = scalar_lea.vmem [#allocation2], %s232
        // Predicated region
        $region75: #{ffnn_forward.1} parent=73 // pred_check
          %p234 = pneg %p37
        $region76: #{ffnn_forward.1} parent=73 // pred_check_branch
          %236 = sbr.rel (%p234) target = $region78
        $region77: #{ffnn_forward.1} parent=73 // pred_region
          _
        $region78: #{ffnn_forward.1} parent=73 // pred_fallthru
          _
        %s237 = sand.u32 %s24, 1
        %s238 = sand.u32 %s24, 1
        %s239 = smul.addr %s238, 16
        %s240 = scalar_lea.vmem [#allocation2], %s239
        %p241 = pneg %p37
        %p242 = pneg %p34
        %p243 = pneg %p58
        %p244 = pneg %p55
        %p245 = pneg %p79
        %p246 = pneg %p76
        %p247 = pneg %p100
        %p248 = pneg %p97
        %p249 = pneg %p121
        %p250 = pneg %p118
        %p251 = pneg %p147
        %p252 = pneg %p144
        %p253 = scmp.lt.s32.totalorder %s16, 1
        %s254 = scalar_select %p253, %s16, 1
        %s255 = smul.addr %s254, 8
        %s256 = scalar_lea.vmem %s5, %s255
        %p257 = scmp.lt.s32.totalorder %s16, 1
        %s258 = scalar_select %p257, %s16, 1
        %s259 = smul.addr %s258, 8
        %s260 = scalar_lea.vmem %s5, %s259
        %v262 = vld [vmem:[%s233] sm:$0xff]
        %v263 = vld [vmem:[%s233 + $0x8] sm:$0xff]
        %v264 = vpack.c.bf16 %v263, %v262
        %v265 = vld [vmem:[%s1] sm:$0xf]
        %v266 = vld [vmem:[%s1 + $0x4] sm:$0xf]
        %v267 = vld [vmem:[%s1 + $0x8] sm:$0xf]
        %v268 = vld [vmem:[%s1 + $0xc] sm:$0xf]
        %v269 = vld [vmem:[%s2] sm:$0xff]
        %v270 = vld [vmem:[%s2 + $0x8] sm:$0xff]
        %v271 = vld [vmem:[%s2 + $0x10] sm:$0xff]
        %v272 = vld [vmem:[%s2 + $0x18] sm:$0xff]
        %274 = vset.pattern.permute.xlu0 0
        %275 = vperm.xlu0 %274, %v269
        %v276 = vpop.permute.xlu0 %275
        %279 = vset.pattern.permute.xlu0 0
        %280 = vperm.xlu0 %279, %v270
        %v281 = vpop.permute.xlu0 %280
        %284 = vset.pattern.permute.xlu0 0
        %285 = vperm.xlu0 %284, %v271
        %v286 = vpop.permute.xlu0 %285
        %289 = vset.pattern.permute.xlu0 0
        %290 = vperm.xlu0 %289, %v272
        %v291 = vpop.permute.xlu0 %290
        %v297 = vunpack.c.l.b16 %v265
        %v298 = vunpack.c.l.b16 %v266
        %v299 = vunpack.c.l.b16 %v267
        %v300 = vunpack.c.l.b16 %v268
        %v301 = vpack.c.b16 %v298, %v297
        %v302 = vpack.c.b16 %v300, %v299
        %vm303 = vcmask 130048
        %v305 = vsel %vm303, %v301, 0
        %v308 = vsel %vm303, %v302, 0
        %310 = vmatprep.subr.bf16.mxu0 0
        %311 = vmatpush1.bf16.msra.mxu0 %v264
        %312 = vmatprep.subr.bf16.mxu0 0
        %313 = vmatpush1.bf16.msra.mxu0 0
        %314 = vmatprep.subr.bf16.mxu0 0
        %315 = vmatpush1.bf16.msra.mxu0 0
        %316 = vmatprep.subr.bf16.mxu0 0
        %317 = vmatpush1.bf16.msra.mxu0 0
        %318 = vmatprep.subr.bf16.mxu0 0
        %319 = vmatpush1.bf16.msra.mxu0 0
        %320 = vmatprep.subr.bf16.mxu0 0
        %321 = vmatpush1.bf16.msra.mxu0 0
        %322 = vmatprep.subr.bf16.mxu0 0
        %323 = vmatpush1.bf16.msra.mxu0 0
        %324 = vmatprep.subr.bf16.mxu0 0
        %325 = vmatpush1.bf16.msra.mxu0 0
        %326 = vmatprep.subr.bf16.mxu0 0
        %327 = vmatpush1.bf16.msra.mxu0 0
        %328 = vmatprep.subr.bf16.mxu0 0
        %329 = vmatpush1.bf16.msra.mxu0 0
        %330 = vmatprep.subr.bf16.mxu0 0
        %331 = vmatpush1.bf16.msra.mxu0 0
        %332 = vmatprep.subr.bf16.mxu0 0
        %333 = vmatpush1.bf16.msra.mxu0 0
        %334 = vmatprep.subr.bf16.mxu0 0
        %335 = vmatpush1.bf16.msra.mxu0 0
        %336 = vmatprep.subr.bf16.mxu0 0
        %337 = vmatpush1.bf16.msra.mxu0 0
        %338 = vmatprep.subr.bf16.mxu0 0
        %339 = vmatpush1.bf16.msra.mxu0 0
        %340 = vmatprep.subr.bf16.mxu0 0
        %341 = vmatpush1.bf16.msra.mxu0 0
        %342 = vmatprep.mubr.bf16.mxu0 0
        %343 = vmatmul.mubr.bf16.gmra.mrb[0].mxu0 %v305
        %v344 = vpop.f32.mrb[0].mxu0
        %v345 = vadd.f32 %v276, %v344
        %v346 = vpop.f32.mrb[0].mxu0
        %v347 = vpop.f32.mrb[0].mxu0
        %v348 = vadd.f32 %v281, %v347
        %v349 = vpop.f32.mrb[0].mxu0
        %350 = vmatprep.mubr.bf16.mxu0 0
        %351 = vmatmul.mubr.bf16.gmra.mrb[0].mxu0 %v308
        %v352 = vpop.f32.mrb[0].mxu0
        %v353 = vadd.f32 %v286, %v352
        %v354 = vpop.f32.mrb[0].mxu0
        %v355 = vpop.f32.mrb[0].mxu0
        %v356 = vadd.f32 %v291, %v355
        %v357 = vpop.f32.mrb[0].mxu0
        %358 = vdwg.mxu0
        %v359 = vtanh.pop %v345
        %v360 = vtanh.pop %v348
        %v361 = vtanh.pop %v353
        %v362 = vtanh.pop %v356
        %v363 = vld [vmem:[%s3] sm:$0xf]
        %v364 = vpack.c.bf16 %v360, %v359
        %v365 = vpack.c.bf16 %v362, %v361
        %v366 = vld [vmem:[%s4] sm:$0xff]
        %368 = vset.pattern.permute.xlu0 0
        %369 = vperm.xlu0 %368, %v366
        %v370 = vpop.permute.xlu0 %369
        %vm372 = vcmask 261120
        %v374 = vsel %vm372, %v363, 0
        %376 = vmatprep.subr.bf16.mxu0 0
        %377 = vmatpush1.bf16.msra.mxu0 %v364
        %378 = vmatprep.subr.bf16.mxu0 0
        %379 = vmatpush1.bf16.msra.mxu0 %v365
        %380 = vmatprep.subr.bf16.mxu0 0
        %381 = vmatpush1.bf16.msra.mxu0 0
        %382 = vmatprep.subr.bf16.mxu0 0
        %383 = vmatpush1.bf16.msra.mxu0 0
        %384 = vmatprep.subr.bf16.mxu0 0
        %385 = vmatpush1.bf16.msra.mxu0 0
        %386 = vmatprep.subr.bf16.mxu0 0
        %387 = vmatpush1.bf16.msra.mxu0 0
        %388 = vmatprep.subr.bf16.mxu0 0
        %389 = vmatpush1.bf16.msra.mxu0 0
        %390 = vmatprep.subr.bf16.mxu0 0
        %391 = vmatpush1.bf16.msra.mxu0 0
        %392 = vmatprep.subr.bf16.mxu0 0
        %393 = vmatpush1.bf16.msra.mxu0 0
        %394 = vmatprep.subr.bf16.mxu0 0
        %395 = vmatpush1.bf16.msra.mxu0 0
        %396 = vmatprep.subr.bf16.mxu0 0
        %397 = vmatpush1.bf16.msra.mxu0 0
        %398 = vmatprep.subr.bf16.mxu0 0
        %399 = vmatpush1.bf16.msra.mxu0 0
        %400 = vmatprep.subr.bf16.mxu0 0
        %401 = vmatpush1.bf16.msra.mxu0 0
        %402 = vmatprep.subr.bf16.mxu0 0
        %403 = vmatpush1.bf16.msra.mxu0 0
        %404 = vmatprep.subr.bf16.mxu0 0
        %405 = vmatpush1.bf16.msra.mxu0 0
        %406 = vmatprep.subr.bf16.mxu0 0
        %407 = vmatpush1.bf16.msra.mxu0 0
        %408 = vmatprep.mubr.bf16.mxu0 0
        %409 = vmatmul.mubr.bf16.gmra.mrb[0].mxu0 %v374
        %v410 = vpop.f32.mrb[0].mxu0
        %v411 = vadd.f32 %v370, %v410
        %v412 = vpop.f32.mrb[0].mxu0
        %v413 = vpop.f32.mrb[0].mxu0
        %v414 = vpop.f32.mrb[0].mxu0
        %415 = vdwg.mxu0
        %v416 = vrot.slane %v411, 4
        %v417 = vmax.f32 %v411, %v416
        %v418 = vrot.slane %v417, 2
        %v419 = vmax.f32 %v417, %v418
        %v420 = vrot.slane %v419, 1
        %v421 = vmax.f32 %v419, %v420
        %v422 = vsub.f32 %v411, %v421
        %v423 = vmul.f32 %v422, 1.442695
        %v424 = vpow.pop %v423
        %v425 = vrot.slane %v424, 4
        %v426 = vadd.f32 %v424, %v425
        %v427 = vrot.slane %v426, 2
        %v428 = vadd.f32 %v426, %v427
        %v429 = vrot.slane %v428, 1
        %v430 = vadd.f32 %v428, %v429
        %v431 = vrcp.pop %v430
        %v432 = vmul.f32 %v424, %v431
        %433 = vst [vmem:[%s260] sm:$0xff] %v432
        %p434 = scmp.lt.s32.totalorder %s16, 1
        %s435 = scalar_select %p434, %s16, 1
        %s436 = smul.addr %s435, 8
        %s437 = scalar_lea.vmem %s5, %s436
        // Predicated region
        $region79: #{ffnn_forward.1} parent=73 // pred_check
          %p438 = pneg %p144
        $region80: #{ffnn_forward.1} parent=73 // pred_check_branch
          %440 = sbr.rel (%p438) target = $region82
        $region81: #{ffnn_forward.1} parent=73 // pred_region
          _
        $region82: #{ffnn_forward.1} parent=73 // pred_fallthru
          _
      $region74: #{ffnn_forward.1} parent=5 // pred_fallthru
        _
      %p441 = scmp.le.s32.totalorder 2, %s11
      // Predicated region
      $region83: #{ffnn_forward.1} parent=5 // pred_check
        %p442 = pneg %p441
      $region84: #{ffnn_forward.1} parent=5 // pred_check_branch
        %444 = sbr.rel (%p442) target = $region86
      $region85: #{ffnn_forward.1} parent=5 // pred_region
        %s445 = ssub.s32 %s11, 2
        // Predicated region
        $region87: #{ffnn_forward.1} parent=85 // pred_check
          %p446 = pneg %p150
        $region88: #{ffnn_forward.1} parent=85 // pred_check_branch
          %448 = sbr.rel (%p446) target = $region90
        $region89: #{ffnn_forward.1} parent=85 // pred_region
          %p449 = scmp.lt.s32.totalorder %s17, 1
          %s450 = scalar_select %p449, %s17, 1
          %s451 = smul.addr %s450, 8
          %s452 = scalar_lea.vmem %s5, %s451
        $region90: #{ffnn_forward.1} parent=85 // pred_fallthru
          _
      $region86: #{ffnn_forward.1} parent=5 // pred_fallthru
        _
    $region6: #{ffnn_forward.1} parent=1 // loop_footer
      %s15 = sadd.s32 1, %s11
    $region7: #{ffnn_forward.1} parent=1 // loop_footer_branch
      %10 = sbr.rel target = $region3
    $region8: #{ffnn_forward.1} parent=1 // loop_exit
      _

</llo_original>
